<compile_context>
chip_gen: v7x
topology: tpu7x:2x2x1
jax: 0.10.0
libtpu: 0.0.40
codegen_flags: <defaults>
</compile_context>

<pallas_src>
import numpy as np
import jax
import jax.numpy as jnp
from jax.experimental import pallas as pl
from jax.experimental.pallas import tpu as pltpu

WINDOW_SIZE = 2


def _round_up(x, m):
    return ((x + m - 1) // m) * m


def _pick_tile(n):
    # n is a multiple of 128; pick the largest lane-dense tile dividing it.
    for t in (512, 256, 128):
        if n % t == 0:
            return t
    return 128


def gow_kernel(ids_base_ref, ids_shift_ref, adj_ref, acc_ref):
    # ids_base_ref  : int32[1, TK]      token ids of this sequence tile (lane-dense)
    # ids_shift_ref : int32[2W, TK, 1]  window-shifted ids (+-1..+-W), -1 padded
    # adj_ref       : f32[TV, TV]       adjacency output tile (row block i, col block j)
    # acc_ref       : f32[TV, TV]       co-occurrence count accumulator (scratch)
    i = pl.program_id(0)
    j = pl.program_id(1)
    k = pl.program_id(2)
    last = k == pl.num_programs(2) - 1

    TV = adj_ref.shape[0]
    nshift, TK, _ = ids_shift_ref.shape

    @pl.when(k == 0)
    def _():
        acc_ref[...] = jnp.zeros_like(acc_ref)

    # lhs one-hot [TV, TK]: onehot_u[m, s] = (global row id i*TV+m == token[s]).
    # Sublane iota vs lane-dense ids -> cheap sublane splat, no relayout.
    row_iota = jax.lax.broadcasted_iota(jnp.int32, (TV, TK), 0) + i * TV
    onehot_u = (row_iota == ids_base_ref[...]).astype(jnp.bfloat16)

    # rhs neighbour indicator [TK, TV]: nb[s, n] = any window-shifted token at
    # position s equals global col id j*TV+n.  Bidirectional shifts make the
    # resulting counts symmetric, removing the [Vp,Vp] transpose entirely.
    col_iota = jax.lax.broadcasted_iota(jnp.int32, (TK, TV), 1) + j * TV
    nb = col_iota == ids_shift_ref[0]
    for d in range(1, nshift):                       # static unroll (2W terms)
        nb = nb | (col_iota == ids_shift_ref[d])
    nb_bf16 = nb.astype(jnp.bfloat16)

    # MXU-canonical (M, K) x (K, N) contraction with f32 accumulation.
    acc_ref[...] += jax.lax.dot_general(
        onehot_u, nb_bf16, (((1,), (0,)), ((), ())),
        preferred_element_type=jnp.float32)

    # Off-diagonal output tiles: plain threshold, no iota masks.
    @pl.when(last & (i != j))
    def _():
        adj_ref[...] = (acc_ref[...] > 0.0).astype(adj_ref.dtype)

    # Diagonal output tiles: also zero the self-loop diagonal.
    @pl.when(last & (i == j))
    def _():
        r = jax.lax.broadcasted_iota(jnp.int32, (TV, TV), 0)
        c = jax.lax.broadcasted_iota(jnp.int32, (TV, TV), 1)
        adj_ref[...] = ((acc_ref[...] > 0.0) & (r != c)).astype(adj_ref.dtype)


def graph_of_words(token_ids, emb_table, window_size=WINDOW_SIZE):
    S = int(token_ids.shape[0])
    V, _ = emb_table.shape

    Vp = _round_up(max(int(V), 1), 128)      # lane-dense padded vocab
    TV = _pick_tile(Vp)                      # output tile edge (rows == cols)
    Sp = _round_up(max(S, 1), 128)           # padded sequence length
    TK = _pick_tile(Sp)                      # sequence (reduction) tile
    nshift = 2 * window_size

    ids = token_ids.astype(jnp.int32)
    neg = jnp.full((S,), -1, jnp.int32)      # -1 never matches a vocab id
    rows = []
    for d in range(1, window_size + 1):
        if d < S:
            rows.append(jnp.concatenate([ids[d:], neg[:d]]))        # shift +d
            rows.append(jnp.concatenate([neg[:d], ids[:S - d]]))    # shift -d
        else:
            rows.append(neg)
            rows.append(neg)

    pad = Sp - S
    ids_base = jnp.pad(ids, (0, pad), constant_values=-1).reshape(1, Sp)
    ids_shift = jnp.pad(jnp.stack(rows, 0), ((0, 0), (0, pad)),
                        constant_values=-1)[:, :, None]             # [2W, Sp, 1]

    grid = (Vp // TV, Vp // TV, Sp // TK)

    adj_padded = pl.pallas_call(
        gow_kernel,
        out_shape=jax.ShapeDtypeStruct((Vp, Vp), jnp.float32),
        grid_spec=pltpu.PrefetchScalarGridSpec(
            num_scalar_prefetch=0,
            grid=grid,
            in_specs=[
                pl.BlockSpec((1, TK), lambda i, j, k: (0, k)),
                pl.BlockSpec((nshift, TK, 1), lambda i, j, k: (0, k, 0)),
            ],
            out_specs=pl.BlockSpec((TV, TV), lambda i, j, k: (i, j)),
            scratch_shapes=[pltpu.VMEM((TV, TV), jnp.float32)]),
        compiler_params=pltpu.CompilerParams(
            dimension_semantics=("parallel", "parallel", "arbitrary"),
            vmem_limit_bytes=48 * 1024 * 1024),
    )(ids_base, ids_shift)

    adj = adj_padded[:V, :V]
    # Node features are exactly the embedding rows of the vocab ids; no kernel
    # work needed (an identity-gather matmul would be pure waste).
    feat = emb_table.astype(jnp.float32)
    return adj, feat


def reference(token_ids, emb_table, window_size=WINDOW_SIZE):
    tok = np.asarray(token_ids)
    V, _ = emb_table.shape
    S = tok.shape[0]
    adj = np.zeros((V, V), np.float32)
    for i in range(S):
        for j in range(i + 1, min(i + window_size + 1, S)):
            if tok[i] != tok[j]:
                adj[tok[i], tok[j]] = 1.0
                adj[tok[j], tok[i]] = 1.0
    feat = np.asarray(emb_table, np.float32)
    return adj, feat


if __name__ == "__main__":
    key = jax.random.PRNGKey(0)
    k_tok, k_emb = jax.random.split(key)

    S = 16            # number of "words" in the text
    V = 8             # vocabulary size (unique word ids)
    D = 32            # embedding dimension (embedding model)

    token_ids = jax.random.randint(k_tok, (S,), 0, V, dtype=jnp.int32)
    emb_table = jax.random.normal(k_emb, (V, D), dtype=jnp.float32)

    adj, feat = graph_of_words(token_ids, emb_table, WINDOW_SIZE)
    jax.block_until_ready((adj, feat))

    adj_ref, feat_ref = reference(np.asarray(token_ids), np.asarray(emb_table))
    assert np.allclose(np.asarray(adj), adj_ref), "adjacency mismatch"
    assert np.allclose(np.asarray(feat), feat_ref, atol=1e-6), "feature mismatch"

    print("KERNEL_OK")
</pallas_src>

<mosaic_0001>
module attributes {stable_mosaic.version = 11 : i64} {
  func.func @gow_kernel(%arg0: i32, %arg1: i32, %arg2: i32, %arg3: memref<1x128xi32, #tpu.memory_space<vmem>>, %arg4: memref<4x128x1xi32, #tpu.memory_space<vmem>>, %arg5: memref<128x128xf32, #tpu.memory_space<vmem>>, %arg6: memref<128x128xf32, #tpu.memory_space<vmem>>) attributes {dimension_semantics = [#tpu.dimension_semantics<parallel>, #tpu.dimension_semantics<parallel>, #tpu.dimension_semantics<arbitrary>], iteration_bounds = array<i64: 1, 1, 1>, scalar_prefetch = 0 : i64, scratch_operands = 1 : i64, tpu.core_type = #tpu.core_type<tc>, window_params = [{transform_indices = @transform_0, window_bounds = array<i64: 1, 128>}, {transform_indices = @transform_1, window_bounds = array<i64: 4, 128, 1>}, {transform_indices = @transform_2, window_bounds = array<i64: 128, 128>}]} {
    %c0_i32 = arith.constant 0 : i32
    %0 = arith.cmpi eq, %arg2, %c0_i32 : i32
    %c0_i32_0 = arith.constant 0 : i32
    %1 = arith.cmpi eq, %arg2, %c0_i32_0 : i32
    %2 = arith.extui %1 : i1 to i32
    %c0_i32_1 = arith.constant 0 : i32
    %3 = arith.cmpi ne, %2, %c0_i32_1 : i32
    scf.if %3 {
      %cst_19 = arith.constant 0.000000e+00 : f32
      %52 = vector.broadcast %cst_19 : f32 to vector<128x128xf32>
      %c0_20 = arith.constant 0 : index
      %c0_21 = arith.constant 0 : index
      %53 = vector.load %arg6[%c0_20, %c0_21] : memref<128x128xf32, #tpu.memory_space<vmem>>, vector<128x128xf32>
      tpu.vector_store %arg6[%c0_20, %c0_21], %52 {strides = array<i32>} : memref<128x128xf32, #tpu.memory_space<vmem>>, vector<128x128xf32>,
    } else {
    }
    %4 = tpu.iota {dimensions = array<i32: 0>} : vector<128x128xi32>
    %c128_i32 = arith.constant 128 : i32
    %5 = arith.muli %arg0, %c128_i32 : i32
    %6 = vector.broadcast %5 : i32 to vector<128x128xi32>
    %7 = arith.addi %4, %6 : vector<128x128xi32>
    %c0 = arith.constant 0 : index
    %c0_2 = arith.constant 0 : index
    %8 = vector.load %arg3[%c0, %c0_2] : memref<1x128xi32, #tpu.memory_space<vmem>>, vector<1x128xi32>
    %9 = vector.broadcast %8 : vector<1x128xi32> to vector<128x128xi32>
    %10 = arith.cmpi eq, %7, %9 : vector<128x128xi32>
    %11 = arith.extui %10 : vector<128x128xi1> to vector<128x128xi32>
    %12 = arith.sitofp %11 : vector<128x128xi32> to vector<128x128xf32>
    %13 = arith.truncf %12 : vector<128x128xf32> to vector<128x128xbf16>
    %14 = tpu.iota {dimensions = array<i32: 1>} : vector<128x128xi32>
    %c128_i32_3 = arith.constant 128 : i32
    %15 = arith.muli %arg1, %c128_i32_3 : i32
    %16 = vector.broadcast %15 : i32 to vector<128x128xi32>
    %17 = arith.addi %14, %16 : vector<128x128xi32>
    %c0_4 = arith.constant 0 : index
    %c0_5 = arith.constant 0 : index
    %c0_6 = arith.constant 0 : index
    %18 = vector.load %arg4[%c0_4, %c0_5, %c0_6] : memref<4x128x1xi32, #tpu.memory_space<vmem>>, vector<1x128x1xi32>
    %19 = vector.shape_cast %18 : vector<1x128x1xi32> to vector<128x1xi32>
    %20 = vector.broadcast %19 : vector<128x1xi32> to vector<128x128xi32>
    %21 = arith.cmpi eq, %17, %20 : vector<128x128xi32>
    %c1 = arith.constant 1 : index
    %c0_7 = arith.constant 0 : index
    %c0_8 = arith.constant 0 : index
    %22 = vector.load %arg4[%c1, %c0_7, %c0_8] : memref<4x128x1xi32, #tpu.memory_space<vmem>>, vector<1x128x1xi32>
    %23 = vector.shape_cast %22 : vector<1x128x1xi32> to vector<128x1xi32>
    %24 = vector.broadcast %23 : vector<128x1xi32> to vector<128x128xi32>
    %25 = arith.cmpi eq, %17, %24 : vector<128x128xi32>
    %26 = arith.ori %21, %25 : vector<128x128xi1>
    %c2 = arith.constant 2 : index
    %c0_9 = arith.constant 0 : index
    %c0_10 = arith.constant 0 : index
    %27 = vector.load %arg4[%c2, %c0_9, %c0_10] : memref<4x128x1xi32, #tpu.memory_space<vmem>>, vector<1x128x1xi32>
    %28 = vector.shape_cast %27 : vector<1x128x1xi32> to vector<128x1xi32>
    %29 = vector.broadcast %28 : vector<128x1xi32> to vector<128x128xi32>
    %30 = arith.cmpi eq, %17, %29 : vector<128x128xi32>
    %31 = arith.ori %26, %30 : vector<128x128xi1>
    %c3 = arith.constant 3 : index
    %c0_11 = arith.constant 0 : index
    %c0_12 = arith.constant 0 : index
    %32 = vector.load %arg4[%c3, %c0_11, %c0_12] : memref<4x128x1xi32, #tpu.memory_space<vmem>>, vector<1x128x1xi32>
    %33 = vector.shape_cast %32 : vector<1x128x1xi32> to vector<128x1xi32>
    %34 = vector.broadcast %33 : vector<128x1xi32> to vector<128x128xi32>
    %35 = arith.cmpi eq, %17, %34 : vector<128x128xi32>
    %36 = arith.ori %31, %35 : vector<128x128xi1>
    %37 = arith.extui %36 : vector<128x128xi1> to vector<128x128xi32>
    %38 = arith.sitofp %37 : vector<128x128xi32> to vector<128x128xf32>
    %39 = arith.truncf %38 : vector<128x128xf32> to vector<128x128xbf16>
    %c0_13 = arith.constant 0 : index
    %c0_14 = arith.constant 0 : index
    %40 = vector.load %arg6[%c0_13, %c0_14] : memref<128x128xf32, #tpu.memory_space<vmem>>, vector<128x128xf32>
    %cst = arith.constant dense<0.000000e+00> : vector<128x128xf32>
    %41 = tpu.matmul %13, %39, %cst {dimension_numbers = #tpu.dot_dimension_numbers<[1], [0], [0], [1], [0, 0, 1, 1], [], []>} : vector<128x128xbf16>, vector<128x128xbf16>, vector<128x128xf32> -> vector<128x128xf32>
    %42 = arith.addf %40, %41 : vector<128x128xf32>
    %c0_15 = arith.constant 0 : index
    %c0_16 = arith.constant 0 : index
    %43 = vector.load %arg6[%c0_15, %c0_16] : memref<128x128xf32, #tpu.memory_space<vmem>>, vector<128x128xf32>
    tpu.vector_store %arg6[%c0_15, %c0_16], %42 {strides = array<i32>} : memref<128x128xf32, #tpu.memory_space<vmem>>, vector<128x128xf32>,
    %44 = arith.cmpi ne, %arg0, %arg1 : i32
    %45 = arith.andi %0, %44 : i1
    %46 = arith.extui %45 : i1 to i32
    %c0_i32_17 = arith.constant 0 : i32
    %47 = arith.cmpi ne, %46, %c0_i32_17 : i32
    scf.if %47 {
      %c0_19 = arith.constant 0 : index
      %c0_20 = arith.constant 0 : index
      %52 = vector.load %arg6[%c0_19, %c0_20] : memref<128x128xf32, #tpu.memory_space<vmem>>, vector<128x128xf32>
      %cst_21 = arith.constant 0.000000e+00 : f32
      %53 = vector.broadcast %cst_21 : f32 to vector<128x128xf32>
      %54 = arith.cmpf ogt, %52, %53 : vector<128x128xf32>
      %55 = arith.extui %54 : vector<128x128xi1> to vector<128x128xi32>
      %56 = arith.sitofp %55 : vector<128x128xi32> to vector<128x128xf32>
      %c0_22 = arith.constant 0 : index
      %c0_23 = arith.constant 0 : index
      %57 = vector.load %arg5[%c0_22, %c0_23] : memref<128x128xf32, #tpu.memory_space<vmem>>, vector<128x128xf32>
      tpu.vector_store %arg5[%c0_22, %c0_23], %56 {strides = array<i32>} : memref<128x128xf32, #tpu.memory_space<vmem>>, vector<128x128xf32>,
    } else {
    }
    %48 = arith.cmpi eq, %arg0, %arg1 : i32
    %49 = arith.andi %0, %48 : i1
    %50 = arith.extui %49 : i1 to i32
    %c0_i32_18 = arith.constant 0 : i32
    %51 = arith.cmpi ne, %50, %c0_i32_18 : i32
    scf.if %51 {
      %52 = tpu.iota {dimensions = array<i32: 0>} : vector<128x128xi32>
      %53 = tpu.iota {dimensions = array<i32: 1>} : vector<128x128xi32>
      %c0_19 = arith.constant 0 : index
      %c0_20 = arith.constant 0 : index
      %54 = vector.load %arg6[%c0_19, %c0_20] : memref<128x128xf32, #tpu.memory_space<vmem>>, vector<128x128xf32>
      %cst_21 = arith.constant 0.000000e+00 : f32
      %55 = vector.broadcast %cst_21 : f32 to vector<128x128xf32>
      %56 = arith.cmpf ogt, %54, %55 : vector<128x128xf32>
      %57 = arith.cmpi ne, %52, %53 : vector<128x128xi32>
      %58 = arith.andi %56, %57 : vector<128x128xi1>
      %59 = arith.extui %58 : vector<128x128xi1> to vector<128x128xi32>
      %60 = arith.sitofp %59 : vector<128x128xi32> to vector<128x128xf32>
      %c0_22 = arith.constant 0 : index
      %c0_23 = arith.constant 0 : index
      %61 = vector.load %arg5[%c0_22, %c0_23] : memref<128x128xf32, #tpu.memory_space<vmem>>, vector<128x128xf32>
      tpu.vector_store %arg5[%c0_22, %c0_23], %60 {strides = array<i32>} : memref<128x128xf32, #tpu.memory_space<vmem>>, vector<128x128xf32>,
    } else {
    }
    return
  }
  func.func @transform_0(%arg0: i32, %arg1: i32, %arg2: i32) -> (i32, i32) {
    %c0_i32 = arith.constant 0 : i32
    %c0_i32_0 = arith.constant 0 : i32
    return %c0_i32, %arg2 : i32, i32
  }
  func.func @transform_1(%arg0: i32, %arg1: i32, %arg2: i32) -> (i32, i32, i32) {
    %c0_i32 = arith.constant 0 : i32
    %c0_i32_0 = arith.constant 0 : i32
    %c0_i32_1 = arith.constant 0 : i32
    return %c0_i32, %arg2, %c0_i32_0 : i32, i32, i32
  }
  func.func @transform_2(%arg0: i32, %arg1: i32, %arg2: i32) -> (i32, i32) {
    %c0_i32 = arith.constant 0 : i32
    return %arg0, %arg1 : i32, i32
  }
}

</mosaic_0001>

<llo_original>
// kernel: tpu_custom_call.1
$region0: #{tpu_custom_call.1}
  #allocation0 [shape = 'u32[]', space=smem, size = 0x4, offset = 0x4, fixed_abs, tag = 'smem constant byte address 0x4 - core index']
  #allocation1 [shape = 'u32[144,128]{1,0:T(1,128)}', space=vmem, size = 0x12000, scoped, tag = 'internal scratch']
  #allocation2 [shape = 'f32[128,128]{1,0:T(8,128)}', space=vmem, size = 0x10000, scoped, tag = 'scratch operand']
  %s0 = inlined_call_operand.vmem [shape: s32[1,128], index: 0, kind: input, shape index: {}]
  %s1 = inlined_call_operand.vmem [shape: s32[4,128,1], index: 1, kind: input, shape index: {}]
  %s2 = inlined_call_operand.hbm [shape: f32[128,128], index: 2, kind: output, shape index: {}]
  %s3 = sld [smem:[#allocation0]]
  $region30: #{tpu_custom_call.1} parent=0
    _
  %s5 = ssub.s32 1, %s3
  %s6 = scalar_select 0, %s5, %s3
  $region1: #{tpu_custom_call.1} parent=0
    #allocation3 [shape = 'u8[65536]{0}', space=vmem, size = 0x10000, scoped, tag = 'output window, operand 0, single buffered']
    #allocation4 [shape = 's32[1]{0}', space=sflag, size = 0x4, scoped, tag = 'scoped memory for tpu_custom_call.1']
    %7 = vsyncpa [#allocation4], 0
    // Predicated region
    $region2: #{tpu_custom_call.1} parent=1 // pred_check
      _
    $region3: #{tpu_custom_call.1} parent=1 // pred_check_branch
      %9 = sbr.rel (0) target = $region5
    $region4: #{tpu_custom_call.1} parent=1 // pred_region
      _
    $region5: #{tpu_custom_call.1} parent=1 // pred_fallthru
      _
    // Predicated region
    $region6: #{tpu_custom_call.1} parent=1 // pred_check
      _
    $region7: #{tpu_custom_call.1} parent=1 // pred_check_branch
      %11 = sbr.rel (0) target = $region9
    $region8: #{tpu_custom_call.1} parent=1 // pred_region
      _
    $region9: #{tpu_custom_call.1} parent=1 // pred_fallthru
      _
    %p13 = scmp.eq.s32.totalorder 0, 0
    // Predicated region
    $region10: #{tpu_custom_call.1} parent=1 // pred_check
      %p14 = pneg %p13
    $region11: #{tpu_custom_call.1} parent=1 // pred_check_branch
      %16 = sbr.rel (%p14) target = $region13
    $region12: #{tpu_custom_call.1} parent=1 // pred_region
      %17 = vst [vmem:[#allocation2] sm:$0xff] 0.0
      %18 = vst [vmem:[#allocation2 + $0x8] sm:$0xff] 0.0
      %19 = vst [vmem:[#allocation2 + $0x10] sm:$0xff] 0.0
      %20 = vst [vmem:[#allocation2 + $0x18] sm:$0xff] 0.0
      %21 = vst [vmem:[#allocation2 + $0x20] sm:$0xff] 0.0
      %22 = vst [vmem:[#allocation2 + $0x28] sm:$0xff] 0.0
      %23 = vst [vmem:[#allocation2 + $0x30] sm:$0xff] 0.0
      %24 = vst [vmem:[#allocation2 + $0x38] sm:$0xff] 0.0
      %25 = vst [vmem:[#allocation2 + $0x40] sm:$0xff] 0.0
      %26 = vst [vmem:[#allocation2 + $0x48] sm:$0xff] 0.0
      %27 = vst [vmem:[#allocation2 + $0x50] sm:$0xff] 0.0
      %28 = vst [vmem:[#allocation2 + $0x58] sm:$0xff] 0.0
      %29 = vst [vmem:[#allocation2 + $0x60] sm:$0xff] 0.0
      %30 = vst [vmem:[#allocation2 + $0x68] sm:$0xff] 0.0
      %31 = vst [vmem:[#allocation2 + $0x70] sm:$0xff] 0.0
      %32 = vst [vmem:[#allocation2 + $0x78] sm:$0xff] 0.0
    $region13: #{tpu_custom_call.1} parent=1 // pred_fallthru
      _
    %v33 = vlaneseq
    %v34 = vshrl.u32 %v33, 7
    %v35 = vadd.s32 %v34, 8
    %v36 = vadd.s32 %v34, 16
    %v37 = vadd.s32 %v34, 24
    %v38 = vadd.s32 %v34, 32
    %v39 = vadd.s32 %v34, 40
    %v40 = vadd.s32 %v34, 48
    %v41 = vadd.s32 %v34, 56
    %v42 = vadd.s32 %v34, 64
    %v43 = vadd.s32 %v34, 72
    %v44 = vadd.s32 %v34, 80
    %v45 = vadd.s32 %v34, 88
    %v46 = vadd.s32 %v34, 96
    %v47 = vadd.s32 %v34, 104
    %v48 = vadd.s32 %v34, 112
    %v49 = vadd.s32 %v34, 120
    %s50 = smul.u32 0, 128
    %v51 = vstv %s50
    %v52 = vadd.s32 %v34, %v51
    %v53 = vadd.s32 %v35, %v51
    %v54 = vadd.s32 %v36, %v51
    %v55 = vadd.s32 %v37, %v51
    %v56 = vadd.s32 %v38, %v51
    %v57 = vadd.s32 %v39, %v51
    %v58 = vadd.s32 %v40, %v51
    %v59 = vadd.s32 %v41, %v51
    %v60 = vadd.s32 %v42, %v51
    %v61 = vadd.s32 %v43, %v51
    %v62 = vadd.s32 %v44, %v51
    %v63 = vadd.s32 %v45, %v51
    %v64 = vadd.s32 %v46, %v51
    %v65 = vadd.s32 %v47, %v51
    %v66 = vadd.s32 %v48, %v51
    %v67 = vadd.s32 %v49, %v51
    %v68 = vld [vmem:[%s0] sm:$0x1]
    %v69 = vlaneseq
    %v70 = vshrl.u32 %v69, 7
    %v71 = vsub.s32 0, %v70
    %v72 = vrot.slane %v68, %v71
    %vm73 = vcmp.eq.s32.totalorder %v52, %v72
    %vm74 = vcmp.eq.s32.totalorder %v53, %v72
    %vm75 = vcmp.eq.s32.totalorder %v54, %v72
    %vm76 = vcmp.eq.s32.totalorder %v55, %v72
    %vm77 = vcmp.eq.s32.totalorder %v56, %v72
    %vm78 = vcmp.eq.s32.totalorder %v57, %v72
    %vm79 = vcmp.eq.s32.totalorder %v58, %v72
    %vm80 = vcmp.eq.s32.totalorder %v59, %v72
    %vm81 = vcmp.eq.s32.totalorder %v60, %v72
    %vm82 = vcmp.eq.s32.totalorder %v61, %v72
    %vm83 = vcmp.eq.s32.totalorder %v62, %v72
    %vm84 = vcmp.eq.s32.totalorder %v63, %v72
    %vm85 = vcmp.eq.s32.totalorder %v64, %v72
    %vm86 = vcmp.eq.s32.totalorder %v65, %v72
    %vm87 = vcmp.eq.s32.totalorder %v66, %v72
    %vm88 = vcmp.eq.s32.totalorder %v67, %v72
    %v89 = vsel %vm73, 1, 0
    %v90 = vsel %vm74, 1, 0
    %v91 = vsel %vm75, 1, 0
    %v92 = vsel %vm76, 1, 0
    %v93 = vsel %vm77, 1, 0
    %v94 = vsel %vm78, 1, 0
    %v95 = vsel %vm79, 1, 0
    %v96 = vsel %vm80, 1, 0
    %v97 = vsel %vm81, 1, 0
    %v98 = vsel %vm82, 1, 0
    %v99 = vsel %vm83, 1, 0
    %v100 = vsel %vm84, 1, 0
    %v101 = vsel %vm85, 1, 0
    %v102 = vsel %vm86, 1, 0
    %v103 = vsel %vm87, 1, 0
    %v104 = vsel %vm88, 1, 0
    %v105 = vcvt.s32.f32 %v89
    %v106 = vcvt.s32.f32 %v90
    %v107 = vcvt.s32.f32 %v91
    %v108 = vcvt.s32.f32 %v92
    %v109 = vcvt.s32.f32 %v93
    %v110 = vcvt.s32.f32 %v94
    %v111 = vcvt.s32.f32 %v95
    %v112 = vcvt.s32.f32 %v96
    %v113 = vcvt.s32.f32 %v97
    %v114 = vcvt.s32.f32 %v98
    %v115 = vcvt.s32.f32 %v99
    %v116 = vcvt.s32.f32 %v100
    %v117 = vcvt.s32.f32 %v101
    %v118 = vcvt.s32.f32 %v102
    %v119 = vcvt.s32.f32 %v103
    %v120 = vcvt.s32.f32 %v104
    %v121 = vpack.c.bf16 %v106, %v105
    %v122 = vpack.c.bf16 %v108, %v107
    %v123 = vpack.c.bf16 %v110, %v109
    %v124 = vpack.c.bf16 %v112, %v111
    %v125 = vpack.c.bf16 %v114, %v113
    %v126 = vpack.c.bf16 %v116, %v115
    %v127 = vpack.c.bf16 %v118, %v117
    %v128 = vpack.c.bf16 %v120, %v119
    %v129 = vlaneseq
    %v130 = vand.u32 %v129, 127
    %s131 = smul.u32 0, 128
    %v132 = vstv %s131
    %v133 = vadd.s32 %v130, %v132
    %v134 = vld [vmem:[%s1] sm:$0xff]
    %v135 = vld [vmem:[%s1 + $0x8] sm:$0xff]
    %v136 = vld [vmem:[%s1 + $0x10] sm:$0xff]
    %v137 = vld [vmem:[%s1 + $0x18] sm:$0xff]
    %v138 = vld [vmem:[%s1 + $0x20] sm:$0xff]
    %v139 = vld [vmem:[%s1 + $0x28] sm:$0xff]
    %v140 = vld [vmem:[%s1 + $0x30] sm:$0xff]
    %v141 = vld [vmem:[%s1 + $0x38] sm:$0xff]
    %v142 = vld [vmem:[%s1 + $0x40] sm:$0xff]
    %v143 = vld [vmem:[%s1 + $0x48] sm:$0xff]
    %v144 = vld [vmem:[%s1 + $0x50] sm:$0xff]
    %v145 = vld [vmem:[%s1 + $0x58] sm:$0xff]
    %v146 = vld [vmem:[%s1 + $0x60] sm:$0xff]
    %v147 = vld [vmem:[%s1 + $0x68] sm:$0xff]
    %v148 = vld [vmem:[%s1 + $0x70] sm:$0xff]
    %v149 = vld [vmem:[%s1 + $0x78] sm:$0xff]
    %150 = vset.pattern.permute.xlu0 0
    %151 = vperm.xlu0 %150, %v134
    %v152 = vpop.permute.xlu0 %151
    %153 = vset.pattern.permute.xlu0 0
    %154 = vperm.xlu0 %153, %v135
    %v155 = vpop.permute.xlu0 %154
    %156 = vset.pattern.permute.xlu0 0
    %157 = vperm.xlu0 %156, %v136
    %v158 = vpop.permute.xlu0 %157
    %159 = vset.pattern.permute.xlu0 0
    %160 = vperm.xlu0 %159, %v137
    %v161 = vpop.permute.xlu0 %160
    %162 = vset.pattern.permute.xlu0 0
    %163 = vperm.xlu0 %162, %v138
    %v164 = vpop.permute.xlu0 %163
    %165 = vset.pattern.permute.xlu0 0
    %166 = vperm.xlu0 %165, %v139
    %v167 = vpop.permute.xlu0 %166
    %168 = vset.pattern.permute.xlu0 0
    %169 = vperm.xlu0 %168, %v140
    %v170 = vpop.permute.xlu0 %169
    %171 = vset.pattern.permute.xlu0 0
    %172 = vperm.xlu0 %171, %v141
    %v173 = vpop.permute.xlu0 %172
    %174 = vset.pattern.permute.xlu0 0
    %175 = vperm.xlu0 %174, %v142
    %v176 = vpop.permute.xlu0 %175
    %177 = vset.pattern.permute.xlu0 0
    %178 = vperm.xlu0 %177, %v143
    %v179 = vpop.permute.xlu0 %178
    %180 = vset.pattern.permute.xlu0 0
    %181 = vperm.xlu0 %180, %v144
    %v182 = vpop.permute.xlu0 %181
    %183 = vset.pattern.permute.xlu0 0
    %184 = vperm.xlu0 %183, %v145
    %v185 = vpop.permute.xlu0 %184
    %186 = vset.pattern.permute.xlu0 0
    %187 = vperm.xlu0 %186, %v146
    %v188 = vpop.permute.xlu0 %187
    %189 = vset.pattern.permute.xlu0 0
    %190 = vperm.xlu0 %189, %v147
    %v191 = vpop.permute.xlu0 %190
    %192 = vset.pattern.permute.xlu0 0
    %193 = vperm.xlu0 %192, %v148
    %v194 = vpop.permute.xlu0 %193
    %195 = vset.pattern.permute.xlu0 0
    %196 = vperm.xlu0 %195, %v149
    %v197 = vpop.permute.xlu0 %196
    %vm198 = vcmp.eq.s32.totalorder %v133, %v152
    %vm199 = vcmp.eq.s32.totalorder %v133, %v155
    %vm200 = vcmp.eq.s32.totalorder %v133, %v158
    %vm201 = vcmp.eq.s32.totalorder %v133, %v161
    %vm202 = vcmp.eq.s32.totalorder %v133, %v164
    %vm203 = vcmp.eq.s32.totalorder %v133, %v167
    %vm204 = vcmp.eq.s32.totalorder %v133, %v170
    %vm205 = vcmp.eq.s32.totalorder %v133, %v173
    %vm206 = vcmp.eq.s32.totalorder %v133, %v176
    %vm207 = vcmp.eq.s32.totalorder %v133, %v179
    %vm208 = vcmp.eq.s32.totalorder %v133, %v182
    %vm209 = vcmp.eq.s32.totalorder %v133, %v185
    %vm210 = vcmp.eq.s32.totalorder %v133, %v188
    %vm211 = vcmp.eq.s32.totalorder %v133, %v191
    %vm212 = vcmp.eq.s32.totalorder %v133, %v194
    %vm213 = vcmp.eq.s32.totalorder %v133, %v197
    %s214 = scalar_lea.vmem %s1, 128
    %v215 = vld [vmem:[%s214] sm:$0xff]
    %v216 = vld [vmem:[%s214 + $0x8] sm:$0xff]
    %v217 = vld [vmem:[%s214 + $0x10] sm:$0xff]
    %v218 = vld [vmem:[%s214 + $0x18] sm:$0xff]
    %v219 = vld [vmem:[%s214 + $0x20] sm:$0xff]
    %v220 = vld [vmem:[%s214 + $0x28] sm:$0xff]
    %v221 = vld [vmem:[%s214 + $0x30] sm:$0xff]
    %v222 = vld [vmem:[%s214 + $0x38] sm:$0xff]
    %v223 = vld [vmem:[%s214 + $0x40] sm:$0xff]
    %v224 = vld [vmem:[%s214 + $0x48] sm:$0xff]
    %v225 = vld [vmem:[%s214 + $0x50] sm:$0xff]
    %v226 = vld [vmem:[%s214 + $0x58] sm:$0xff]
    %v227 = vld [vmem:[%s214 + $0x60] sm:$0xff]
    %v228 = vld [vmem:[%s214 + $0x68] sm:$0xff]
    %v229 = vld [vmem:[%s214 + $0x70] sm:$0xff]
    %v230 = vld [vmem:[%s214 + $0x78] sm:$0xff]
    %231 = vset.pattern.permute.xlu0 0
    %232 = vperm.xlu0 %231, %v215
    %v233 = vpop.permute.xlu0 %232
    %234 = vset.pattern.permute.xlu0 0
    %235 = vperm.xlu0 %234, %v216
    %v236 = vpop.permute.xlu0 %235
    %237 = vset.pattern.permute.xlu0 0
    %238 = vperm.xlu0 %237, %v217
    %v239 = vpop.permute.xlu0 %238
    %240 = vset.pattern.permute.xlu0 0
    %241 = vperm.xlu0 %240, %v218
    %v242 = vpop.permute.xlu0 %241
    %243 = vset.pattern.permute.xlu0 0
    %244 = vperm.xlu0 %243, %v219
    %v245 = vpop.permute.xlu0 %244
    %246 = vset.pattern.permute.xlu0 0
    %247 = vperm.xlu0 %246, %v220
    %v248 = vpop.permute.xlu0 %247
    %249 = vset.pattern.permute.xlu0 0
    %250 = vperm.xlu0 %249, %v221
    %v251 = vpop.permute.xlu0 %250
    %252 = vset.pattern.permute.xlu0 0
    %253 = vperm.xlu0 %252, %v222
    %v254 = vpop.permute.xlu0 %253
    %255 = vset.pattern.permute.xlu0 0
    %256 = vperm.xlu0 %255, %v223
    %v257 = vpop.permute.xlu0 %256
    %258 = vset.pattern.permute.xlu0 0
    %259 = vperm.xlu0 %258, %v224
    %v260 = vpop.permute.xlu0 %259
    %261 = vset.pattern.permute.xlu0 0
    %262 = vperm.xlu0 %261, %v225
    %v263 = vpop.permute.xlu0 %262
    %264 = vset.pattern.permute.xlu0 0
    %265 = vperm.xlu0 %264, %v226
    %v266 = vpop.permute.xlu0 %265
    %267 = vset.pattern.permute.xlu0 0
    %268 = vperm.xlu0 %267, %v227
    %v269 = vpop.permute.xlu0 %268
    %270 = vset.pattern.permute.xlu0 0
    %271 = vperm.xlu0 %270, %v228
    %v272 = vpop.permute.xlu0 %271
    %273 = vset.pattern.permute.xlu0 0
    %274 = vperm.xlu0 %273, %v229
    %v275 = vpop.permute.xlu0 %274
    %276 = vset.pattern.permute.xlu0 0
    %277 = vperm.xlu0 %276, %v230
    %v278 = vpop.permute.xlu0 %277
    %vm279 = vcmp.eq.s32.totalorder %v133, %v233
    %vm280 = vcmp.eq.s32.totalorder %v133, %v236
    %vm281 = vcmp.eq.s32.totalorder %v133, %v239
    %vm282 = vcmp.eq.s32.totalorder %v133, %v242
    %vm283 = vcmp.eq.s32.totalorder %v133, %v245
    %vm284 = vcmp.eq.s32.totalorder %v133, %v248
    %vm285 = vcmp.eq.s32.totalorder %v133, %v251
    %vm286 = vcmp.eq.s32.totalorder %v133, %v254
    %vm287 = vcmp.eq.s32.totalorder %v133, %v257
    %vm288 = vcmp.eq.s32.totalorder %v133, %v260
    %vm289 = vcmp.eq.s32.totalorder %v133, %v263
    %vm290 = vcmp.eq.s32.totalorder %v133, %v266
    %vm291 = vcmp.eq.s32.totalorder %v133, %v269
    %vm292 = vcmp.eq.s32.totalorder %v133, %v272
    %vm293 = vcmp.eq.s32.totalorder %v133, %v275
    %vm294 = vcmp.eq.s32.totalorder %v133, %v278
    %vm295 = vmor %vm198, %vm279
    %vm296 = vmor %vm199, %vm280
    %vm297 = vmor %vm200, %vm281
    %vm298 = vmor %vm201, %vm282
    %vm299 = vmor %vm202, %vm283
    %vm300 = vmor %vm203, %vm284
    %vm301 = vmor %vm204, %vm285
    %vm302 = vmor %vm205, %vm286
    %vm303 = vmor %vm206, %vm287
    %vm304 = vmor %vm207, %vm288
    %vm305 = vmor %vm208, %vm289
    %vm306 = vmor %vm209, %vm290
    %vm307 = vmor %vm210, %vm291
    %vm308 = vmor %vm211, %vm292
    %vm309 = vmor %vm212, %vm293
    %vm310 = vmor %vm213, %vm294
    %s311 = scalar_lea.vmem %s1, 256
    %v312 = vld [vmem:[%s311] sm:$0xff]
    %v313 = vld [vmem:[%s311 + $0x8] sm:$0xff]
    %v314 = vld [vmem:[%s311 + $0x10] sm:$0xff]
    %v315 = vld [vmem:[%s311 + $0x18] sm:$0xff]
    %v316 = vld [vmem:[%s311 + $0x20] sm:$0xff]
    %v317 = vld [vmem:[%s311 + $0x28] sm:$0xff]
    %v318 = vld [vmem:[%s311 + $0x30] sm:$0xff]
    %v319 = vld [vmem:[%s311 + $0x38] sm:$0xff]
    %v320 = vld [vmem:[%s311 + $0x40] sm:$0xff]
    %v321 = vld [vmem:[%s311 + $0x48] sm:$0xff]
    %v322 = vld [vmem:[%s311 + $0x50] sm:$0xff]
    %v323 = vld [vmem:[%s311 + $0x58] sm:$0xff]
    %v324 = vld [vmem:[%s311 + $0x60] sm:$0xff]
    %v325 = vld [vmem:[%s311 + $0x68] sm:$0xff]
    %v326 = vld [vmem:[%s311 + $0x70] sm:$0xff]
    %v327 = vld [vmem:[%s311 + $0x78] sm:$0xff]
    %328 = vset.pattern.permute.xlu0 0
    %329 = vperm.xlu0 %328, %v312
    %v330 = vpop.permute.xlu0 %329
    %331 = vset.pattern.permute.xlu0 0
    %332 = vperm.xlu0 %331, %v313
    %v333 = vpop.permute.xlu0 %332
    %334 = vset.pattern.permute.xlu0 0
    %335 = vperm.xlu0 %334, %v314
    %v336 = vpop.permute.xlu0 %335
    %337 = vset.pattern.permute.xlu0 0
    %338 = vperm.xlu0 %337, %v315
    %v339 = vpop.permute.xlu0 %338
    %340 = vset.pattern.permute.xlu0 0
    %341 = vperm.xlu0 %340, %v316
    %v342 = vpop.permute.xlu0 %341
    %343 = vset.pattern.permute.xlu0 0
    %344 = vperm.xlu0 %343, %v317
    %v345 = vpop.permute.xlu0 %344
    %346 = vset.pattern.permute.xlu0 0
    %347 = vperm.xlu0 %346, %v318
    %v348 = vpop.permute.xlu0 %347
    %349 = vset.pattern.permute.xlu0 0
    %350 = vperm.xlu0 %349, %v319
    %v351 = vpop.permute.xlu0 %350
    %352 = vset.pattern.permute.xlu0 0
    %353 = vperm.xlu0 %352, %v320
    %v354 = vpop.permute.xlu0 %353
    %355 = vset.pattern.permute.xlu0 0
    %356 = vperm.xlu0 %355, %v321
    %v357 = vpop.permute.xlu0 %356
    %358 = vset.pattern.permute.xlu0 0
    %359 = vperm.xlu0 %358, %v322
    %v360 = vpop.permute.xlu0 %359
    %361 = vset.pattern.permute.xlu0 0
    %362 = vperm.xlu0 %361, %v323
    %v363 = vpop.permute.xlu0 %362
    %364 = vset.pattern.permute.xlu0 0
    %365 = vperm.xlu0 %364, %v324
    %v366 = vpop.permute.xlu0 %365
    %367 = vset.pattern.permute.xlu0 0
    %368 = vperm.xlu0 %367, %v325
    %v369 = vpop.permute.xlu0 %368
    %370 = vset.pattern.permute.xlu0 0
    %371 = vperm.xlu0 %370, %v326
    %v372 = vpop.permute.xlu0 %371
    %373 = vset.pattern.permute.xlu0 0
    %374 = vperm.xlu0 %373, %v327
    %v375 = vpop.permute.xlu0 %374
    %vm376 = vcmp.eq.s32.totalorder %v133, %v330
    %vm377 = vcmp.eq.s32.totalorder %v133, %v333
    %vm378 = vcmp.eq.s32.totalorder %v133, %v336
    %vm379 = vcmp.eq.s32.totalorder %v133, %v339
    %vm380 = vcmp.eq.s32.totalorder %v133, %v342
    %vm381 = vcmp.eq.s32.totalorder %v133, %v345
    %vm382 = vcmp.eq.s32.totalorder %v133, %v348
    %vm383 = vcmp.eq.s32.totalorder %v133, %v351
    %vm384 = vcmp.eq.s32.totalorder %v133, %v354
    %vm385 = vcmp.eq.s32.totalorder %v133, %v357
    %vm386 = vcmp.eq.s32.totalorder %v133, %v360
    %vm387 = vcmp.eq.s32.totalorder %v133, %v363
    %vm388 = vcmp.eq.s32.totalorder %v133, %v366
    %vm389 = vcmp.eq.s32.totalorder %v133, %v369
    %vm390 = vcmp.eq.s32.totalorder %v133, %v372
    %vm391 = vcmp.eq.s32.totalorder %v133, %v375
    %vm392 = vmor %vm295, %vm376
    %vm393 = vmor %vm296, %vm377
    %vm394 = vmor %vm297, %vm378
    %vm395 = vmor %vm298, %vm379
    %vm396 = vmor %vm299, %vm380
    %vm397 = vmor %vm300, %vm381
    %vm398 = vmor %vm301, %vm382
    %vm399 = vmor %vm302, %vm383
    %vm400 = vmor %vm303, %vm384
    %vm401 = vmor %vm304, %vm385
    %vm402 = vmor %vm305, %vm386
    %vm403 = vmor %vm306, %vm387
    %vm404 = vmor %vm307, %vm388
    %vm405 = vmor %vm308, %vm389
    %vm406 = vmor %vm309, %vm390
    %vm407 = vmor %vm310, %vm391
    %s408 = scalar_lea.vmem %s1, 384
    %v409 = vld [vmem:[%s408] sm:$0xff]
    %v410 = vld [vmem:[%s408 + $0x8] sm:$0xff]
    %v411 = vld [vmem:[%s408 + $0x10] sm:$0xff]
    %v412 = vld [vmem:[%s408 + $0x18] sm:$0xff]
    %v413 = vld [vmem:[%s408 + $0x20] sm:$0xff]
    %v414 = vld [vmem:[%s408 + $0x28] sm:$0xff]
    %v415 = vld [vmem:[%s408 + $0x30] sm:$0xff]
    %v416 = vld [vmem:[%s408 + $0x38] sm:$0xff]
    %v417 = vld [vmem:[%s408 + $0x40] sm:$0xff]
    %v418 = vld [vmem:[%s408 + $0x48] sm:$0xff]
    %v419 = vld [vmem:[%s408 + $0x50] sm:$0xff]
    %v420 = vld [vmem:[%s408 + $0x58] sm:$0xff]
    %v421 = vld [vmem:[%s408 + $0x60] sm:$0xff]
    %v422 = vld [vmem:[%s408 + $0x68] sm:$0xff]
    %v423 = vld [vmem:[%s408 + $0x70] sm:$0xff]
    %v424 = vld [vmem:[%s408 + $0x78] sm:$0xff]
    %425 = vset.pattern.permute.xlu0 0
    %426 = vperm.xlu0 %425, %v409
    %v427 = vpop.permute.xlu0 %426
    %428 = vset.pattern.permute.xlu0 0
    %429 = vperm.xlu0 %428, %v410
    %v430 = vpop.permute.xlu0 %429
    %431 = vset.pattern.permute.xlu0 0
    %432 = vperm.xlu0 %431, %v411
    %v433 = vpop.permute.xlu0 %432
    %434 = vset.pattern.permute.xlu0 0
    %435 = vperm.xlu0 %434, %v412
    %v436 = vpop.permute.xlu0 %435
    %437 = vset.pattern.permute.xlu0 0
    %438 = vperm.xlu0 %437, %v413
    %v439 = vpop.permute.xlu0 %438
    %440 = vset.pattern.permute.xlu0 0
    %441 = vperm.xlu0 %440, %v414
    %v442 = vpop.permute.xlu0 %441
    %443 = vset.pattern.permute.xlu0 0
    %444 = vperm.xlu0 %443, %v415
    %v445 = vpop.permute.xlu0 %444
    %446 = vset.pattern.permute.xlu0 0
    %447 = vperm.xlu0 %446, %v416
    %v448 = vpop.permute.xlu0 %447
    %449 = vset.pattern.permute.xlu0 0
    %450 = vperm.xlu0 %449, %v417
    %v451 = vpop.permute.xlu0 %450
    %452 = vset.pattern.permute.xlu0 0
    %453 = vperm.xlu0 %452, %v418
    %v454 = vpop.permute.xlu0 %453
    %455 = vset.pattern.permute.xlu0 0
    %456 = vperm.xlu0 %455, %v419
    %v457 = vpop.permute.xlu0 %456
    %458 = vset.pattern.permute.xlu0 0
    %459 = vperm.xlu0 %458, %v420
    %v460 = vpop.permute.xlu0 %459
    %461 = vset.pattern.permute.xlu0 0
    %462 = vperm.xlu0 %461, %v421
    %v463 = vpop.permute.xlu0 %462
    %464 = vset.pattern.permute.xlu0 0
    %465 = vperm.xlu0 %464, %v422
    %v466 = vpop.permute.xlu0 %465
    %467 = vset.pattern.permute.xlu0 0
    %468 = vperm.xlu0 %467, %v423
    %v469 = vpop.permute.xlu0 %468
    %470 = vset.pattern.permute.xlu0 0
    %471 = vperm.xlu0 %470, %v424
    %v472 = vpop.permute.xlu0 %471
    %vm473 = vcmp.eq.s32.totalorder %v133, %v427
    %vm474 = vcmp.eq.s32.totalorder %v133, %v430
    %vm475 = vcmp.eq.s32.totalorder %v133, %v433
    %vm476 = vcmp.eq.s32.totalorder %v133, %v436
    %vm477 = vcmp.eq.s32.totalorder %v133, %v439
    %vm478 = vcmp.eq.s32.totalorder %v133, %v442
    %vm479 = vcmp.eq.s32.totalorder %v133, %v445
    %vm480 = vcmp.eq.s32.totalorder %v133, %v448
    %vm481 = vcmp.eq.s32.totalorder %v133, %v451
    %vm482 = vcmp.eq.s32.totalorder %v133, %v454
    %vm483 = vcmp.eq.s32.totalorder %v133, %v457
    %vm484 = vcmp.eq.s32.totalorder %v133, %v460
    %vm485 = vcmp.eq.s32.totalorder %v133, %v463
    %vm486 = vcmp.eq.s32.totalorder %v133, %v466
    %vm487 = vcmp.eq.s32.totalorder %v133, %v469
    %vm488 = vcmp.eq.s32.totalorder %v133, %v472
    %vm489 = vmor %vm392, %vm473
    %vm490 = vmor %vm393, %vm474
    %vm491 = vmor %vm394, %vm475
    %vm492 = vmor %vm395, %vm476
    %vm493 = vmor %vm396, %vm477
    %vm494 = vmor %vm397, %vm478
    %vm495 = vmor %vm398, %vm479
    %vm496 = vmor %vm399, %vm480
    %vm497 = vmor %vm400, %vm481
    %vm498 = vmor %vm401, %vm482
    %vm499 = vmor %vm402, %vm483
    %vm500 = vmor %vm403, %vm484
    %vm501 = vmor %vm404, %vm485
    %vm502 = vmor %vm405, %vm486
    %vm503 = vmor %vm406, %vm487
    %vm504 = vmor %vm407, %vm488
    %v505 = vsel %vm489, 1, 0
    %v506 = vsel %vm490, 1, 0
    %v507 = vsel %vm491, 1, 0
    %v508 = vsel %vm492, 1, 0
    %v509 = vsel %vm493, 1, 0
    %v510 = vsel %vm494, 1, 0
    %v511 = vsel %vm495, 1, 0
    %v512 = vsel %vm496, 1, 0
    %v513 = vsel %vm497, 1, 0
    %v514 = vsel %vm498, 1, 0
    %v515 = vsel %vm499, 1, 0
    %v516 = vsel %vm500, 1, 0
    %v517 = vsel %vm501, 1, 0
    %v518 = vsel %vm502, 1, 0
    %v519 = vsel %vm503, 1, 0
    %v520 = vsel %vm504, 1, 0
    %v521 = vcvt.s32.f32 %v505
    %v522 = vcvt.s32.f32 %v506
    %v523 = vcvt.s32.f32 %v507
    %v524 = vcvt.s32.f32 %v508
    %v525 = vcvt.s32.f32 %v509
    %v526 = vcvt.s32.f32 %v510
    %v527 = vcvt.s32.f32 %v511
    %v528 = vcvt.s32.f32 %v512
    %v529 = vcvt.s32.f32 %v513
    %v530 = vcvt.s32.f32 %v514
    %v531 = vcvt.s32.f32 %v515
    %v532 = vcvt.s32.f32 %v516
    %v533 = vcvt.s32.f32 %v517
    %v534 = vcvt.s32.f32 %v518
    %v535 = vcvt.s32.f32 %v519
    %v536 = vcvt.s32.f32 %v520
    %v537 = vpack.c.bf16 %v522, %v521
    %v538 = vpack.c.bf16 %v524, %v523
    %v539 = vpack.c.bf16 %v526, %v525
    %v540 = vpack.c.bf16 %v528, %v527
    %v541 = vpack.c.bf16 %v530, %v529
    %v542 = vpack.c.bf16 %v532, %v531
    %v543 = vpack.c.bf16 %v534, %v533
    %v544 = vpack.c.bf16 %v536, %v535
    %v545 = vld [vmem:[#allocation2] sm:$0xff]
    %v546 = vld [vmem:[#allocation2 + $0x8] sm:$0xff]
    %v547 = vld [vmem:[#allocation2 + $0x10] sm:$0xff]
    %v548 = vld [vmem:[#allocation2 + $0x18] sm:$0xff]
    %v549 = vld [vmem:[#allocation2 + $0x20] sm:$0xff]
    %v550 = vld [vmem:[#allocation2 + $0x28] sm:$0xff]
    %v551 = vld [vmem:[#allocation2 + $0x30] sm:$0xff]
    %v552 = vld [vmem:[#allocation2 + $0x38] sm:$0xff]
    %v553 = vld [vmem:[#allocation2 + $0x40] sm:$0xff]
    %v554 = vld [vmem:[#allocation2 + $0x48] sm:$0xff]
    %v555 = vld [vmem:[#allocation2 + $0x50] sm:$0xff]
    %v556 = vld [vmem:[#allocation2 + $0x58] sm:$0xff]
    %v557 = vld [vmem:[#allocation2 + $0x60] sm:$0xff]
    %v558 = vld [vmem:[#allocation2 + $0x68] sm:$0xff]
    %v559 = vld [vmem:[#allocation2 + $0x70] sm:$0xff]
    %v560 = vld [vmem:[#allocation2 + $0x78] sm:$0xff]
    %561 = vmatprep.subr.bf16.mxu0 0
    %562 = vmatpush1.bf16.msra.mxu0 %v537
    %563 = vmatprep.subr.bf16.mxu0 0
    %564 = vmatpush1.bf16.msra.mxu0 %v538
    %565 = vmatprep.subr.bf16.mxu0 0
    %566 = vmatpush1.bf16.msra.mxu0 %v539
    %567 = vmatprep.subr.bf16.mxu0 0
    %568 = vmatpush1.bf16.msra.mxu0 %v540
    %569 = vmatprep.subr.bf16.mxu0 0
    %570 = vmatpush1.bf16.msra.mxu0 %v541
    %571 = vmatprep.subr.bf16.mxu0 0
    %572 = vmatpush1.bf16.msra.mxu0 %v542
    %573 = vmatprep.subr.bf16.mxu0 0
    %574 = vmatpush1.bf16.msra.mxu0 %v543
    %575 = vmatprep.subr.bf16.mxu0 0
    %576 = vmatpush1.bf16.msra.mxu0 %v544
    %577 = vmatprep.subr.bf16.mxu0 0
    %578 = vmatpush1.bf16.msra.mxu0 0
    %579 = vmatprep.subr.bf16.mxu0 0
    %580 = vmatpush1.bf16.msra.mxu0 0
    %581 = vmatprep.subr.bf16.mxu0 0
    %582 = vmatpush1.bf16.msra.mxu0 0
    %583 = vmatprep.subr.bf16.mxu0 0
    %584 = vmatpush1.bf16.msra.mxu0 0
    %585 = vmatprep.subr.bf16.mxu0 0
    %586 = vmatpush1.bf16.msra.mxu0 0
    %587 = vmatprep.subr.bf16.mxu0 0
    %588 = vmatpush1.bf16.msra.mxu0 0
    %589 = vmatprep.subr.bf16.mxu0 0
    %590 = vmatpush1.bf16.msra.mxu0 0
    %591 = vmatprep.subr.bf16.mxu0 0
    %592 = vmatpush1.bf16.msra.mxu0 0
    %593 = vmatprep.mubr.bf16.mxu0 0
    %594 = vmatmul.mubr.bf16.gmra.mrb[0].mxu0 %v121
    %v595 = vpop.f32.mrb[0].mxu0
    %v596 = vadd.f32 0.0, %v595
    %v597 = vpop.f32.mrb[0].mxu0
    %v598 = vpop.f32.mrb[0].mxu0
    %v599 = vadd.f32 0.0, %v598
    %v600 = vpop.f32.mrb[0].mxu0
    %601 = vmatprep.mubr.bf16.mxu0 0
    %602 = vmatmul.mubr.bf16.gmra.mrb[0].mxu0 %v122
    %v603 = vpop.f32.mrb[0].mxu0
    %v604 = vadd.f32 0.0, %v603
    %v605 = vpop.f32.mrb[0].mxu0
    %v606 = vpop.f32.mrb[0].mxu0
    %v607 = vadd.f32 0.0, %v606
    %v608 = vpop.f32.mrb[0].mxu0
    %609 = vmatprep.mubr.bf16.mxu0 0
    %610 = vmatmul.mubr.bf16.gmra.mrb[0].mxu0 %v123
    %v611 = vpop.f32.mrb[0].mxu0
    %v612 = vadd.f32 0.0, %v611
    %v613 = vpop.f32.mrb[0].mxu0
    %v614 = vpop.f32.mrb[0].mxu0
    %v615 = vadd.f32 0.0, %v614
    %v616 = vpop.f32.mrb[0].mxu0
    %617 = vmatprep.mubr.bf16.mxu0 0
    %618 = vmatmul.mubr.bf16.gmra.mrb[0].mxu0 %v124
    %v619 = vpop.f32.mrb[0].mxu0
    %v620 = vadd.f32 0.0, %v619
    %v621 = vpop.f32.mrb[0].mxu0
    %v622 = vpop.f32.mrb[0].mxu0
    %v623 = vadd.f32 0.0, %v622
    %v624 = vpop.f32.mrb[0].mxu0
    %625 = vmatprep.mubr.bf16.mxu0 0
    %626 = vmatmul.mubr.bf16.gmra.mrb[0].mxu0 %v125
    %v627 = vpop.f32.mrb[0].mxu0
    %v628 = vadd.f32 0.0, %v627
    %v629 = vpop.f32.mrb[0].mxu0
    %v630 = vpop.f32.mrb[0].mxu0
    %v631 = vadd.f32 0.0, %v630
    %v632 = vpop.f32.mrb[0].mxu0
    %633 = vmatprep.mubr.bf16.mxu0 0
    %634 = vmatmul.mubr.bf16.gmra.mrb[0].mxu0 %v126
    %v635 = vpop.f32.mrb[0].mxu0
    %v636 = vadd.f32 0.0, %v635
    %v637 = vpop.f32.mrb[0].mxu0
    %v638 = vpop.f32.mrb[0].mxu0
    %v639 = vadd.f32 0.0, %v638
    %v640 = vpop.f32.mrb[0].mxu0
    %641 = vmatprep.mubr.bf16.mxu0 0
    %642 = vmatmul.mubr.bf16.gmra.mrb[0].mxu0 %v127
    %v643 = vpop.f32.mrb[0].mxu0
    %v644 = vadd.f32 0.0, %v643
    %v645 = vpop.f32.mrb[0].mxu0
    %v646 = vpop.f32.mrb[0].mxu0
    %v647 = vadd.f32 0.0, %v646
    %v648 = vpop.f32.mrb[0].mxu0
    %649 = vmatprep.mubr.bf16.mxu0 0
    %650 = vmatmul.mubr.bf16.gmra.mrb[0].mxu0 %v128
    %v651 = vpop.f32.mrb[0].mxu0
    %v652 = vadd.f32 0.0, %v651
    %v653 = vpop.f32.mrb[0].mxu0
    %v654 = vpop.f32.mrb[0].mxu0
    %v655 = vadd.f32 0.0, %v654
    %v656 = vpop.f32.mrb[0].mxu0
    %657 = vdwg.mxu0
    %v658 = vadd.f32 %v545, %v596
    %v659 = vadd.f32 %v546, %v599
    %v660 = vadd.f32 %v547, %v604
    %v661 = vadd.f32 %v548, %v607
    %v662 = vadd.f32 %v549, %v612
    %v663 = vadd.f32 %v550, %v615
    %v664 = vadd.f32 %v551, %v620
    %v665 = vadd.f32 %v552, %v623
    %v666 = vadd.f32 %v553, %v628
    %v667 = vadd.f32 %v554, %v631
    %v668 = vadd.f32 %v555, %v636
    %v669 = vadd.f32 %v556, %v639
    %v670 = vadd.f32 %v557, %v644
    %v671 = vadd.f32 %v558, %v647
    %v672 = vadd.f32 %v559, %v652
    %v673 = vadd.f32 %v560, %v655
    %674 = vst [vmem:[#allocation2] sm:$0xff] %v658
    %675 = vst [vmem:[#allocation2 + $0x8] sm:$0xff] %v659
    %676 = vst [vmem:[#allocation2 + $0x10] sm:$0xff] %v660
    %677 = vst [vmem:[#allocation2 + $0x18] sm:$0xff] %v661
    %678 = vst [vmem:[#allocation2 + $0x20] sm:$0xff] %v662
    %679 = vst [vmem:[#allocation2 + $0x28] sm:$0xff] %v663
    %680 = vst [vmem:[#allocation2 + $0x30] sm:$0xff] %v664
    %681 = vst [vmem:[#allocation2 + $0x38] sm:$0xff] %v665
    %682 = vst [vmem:[#allocation2 + $0x40] sm:$0xff] %v666
    %683 = vst [vmem:[#allocation2 + $0x48] sm:$0xff] %v667
    %684 = vst [vmem:[#allocation2 + $0x50] sm:$0xff] %v668
    %685 = vst [vmem:[#allocation2 + $0x58] sm:$0xff] %v669
    %686 = vst [vmem:[#allocation2 + $0x60] sm:$0xff] %v670
    %687 = vst [vmem:[#allocation2 + $0x68] sm:$0xff] %v671
    %688 = vst [vmem:[#allocation2 + $0x70] sm:$0xff] %v672
    %689 = vst [vmem:[#allocation2 + $0x78] sm:$0xff] %v673
    %p690 = scmp.ne.s32.totalorder 0, 0
    %p691 = pnand %p13, %p690
    %p692 = pneg %p691
    // Predicated region
    $region14: #{tpu_custom_call.1} parent=1 // pred_check
      _
    $region15: #{tpu_custom_call.1} parent=1 // pred_check_branch
      %694 = sbr.rel (%p691) target = $region17
    $region16: #{tpu_custom_call.1} parent=1 // pred_region
      %v695 = vld [vmem:[#allocation2] sm:$0xff]
      %v696 = vld [vmem:[#allocation2 + $0x8] sm:$0xff]
      %v697 = vld [vmem:[#allocation2 + $0x10] sm:$0xff]
      %v698 = vld [vmem:[#allocation2 + $0x18] sm:$0xff]
      %v699 = vld [vmem:[#allocation2 + $0x20] sm:$0xff]
      %v700 = vld [vmem:[#allocation2 + $0x28] sm:$0xff]
      %v701 = vld [vmem:[#allocation2 + $0x30] sm:$0xff]
      %v702 = vld [vmem:[#allocation2 + $0x38] sm:$0xff]
      %v703 = vld [vmem:[#allocation2 + $0x40] sm:$0xff]
      %v704 = vld [vmem:[#allocation2 + $0x48] sm:$0xff]
      %v705 = vld [vmem:[#allocation2 + $0x50] sm:$0xff]
      %v706 = vld [vmem:[#allocation2 + $0x58] sm:$0xff]
      %v707 = vld [vmem:[#allocation2 + $0x60] sm:$0xff]
      %v708 = vld [vmem:[#allocation2 + $0x68] sm:$0xff]
      %v709 = vld [vmem:[#allocation2 + $0x70] sm:$0xff]
      %v710 = vld [vmem:[#allocation2 + $0x78] sm:$0xff]
      %vm711 = vcmp.gt.f32.partialorder %v695, 0.0
      %vm712 = vcmp.gt.f32.partialorder %v696, 0.0
      %vm713 = vcmp.gt.f32.partialorder %v697, 0.0
      %vm714 = vcmp.gt.f32.partialorder %v698, 0.0
      %vm715 = vcmp.gt.f32.partialorder %v699, 0.0
      %vm716 = vcmp.gt.f32.partialorder %v700, 0.0
      %vm717 = vcmp.gt.f32.partialorder %v701, 0.0
      %vm718 = vcmp.gt.f32.partialorder %v702, 0.0
      %vm719 = vcmp.gt.f32.partialorder %v703, 0.0
      %vm720 = vcmp.gt.f32.partialorder %v704, 0.0
      %vm721 = vcmp.gt.f32.partialorder %v705, 0.0
      %vm722 = vcmp.gt.f32.partialorder %v706, 0.0
      %vm723 = vcmp.gt.f32.partialorder %v707, 0.0
      %vm724 = vcmp.gt.f32.partialorder %v708, 0.0
      %vm725 = vcmp.gt.f32.partialorder %v709, 0.0
      %vm726 = vcmp.gt.f32.partialorder %v710, 0.0
      %v727 = vsel %vm711, 1, 0
      %v728 = vsel %vm712, 1, 0
      %v729 = vsel %vm713, 1, 0
      %v730 = vsel %vm714, 1, 0
      %v731 = vsel %vm715, 1, 0
      %v732 = vsel %vm716, 1, 0
      %v733 = vsel %vm717, 1, 0
      %v734 = vsel %vm718, 1, 0
      %v735 = vsel %vm719, 1, 0
      %v736 = vsel %vm720, 1, 0
      %v737 = vsel %vm721, 1, 0
      %v738 = vsel %vm722, 1, 0
      %v739 = vsel %vm723, 1, 0
      %v740 = vsel %vm724, 1, 0
      %v741 = vsel %vm725, 1, 0
      %v742 = vsel %vm726, 1, 0
      %v743 = vcvt.s32.f32 %v727
      %v744 = vcvt.s32.f32 %v728
      %v745 = vcvt.s32.f32 %v729
      %v746 = vcvt.s32.f32 %v730
      %v747 = vcvt.s32.f32 %v731
      %v748 = vcvt.s32.f32 %v732
      %v749 = vcvt.s32.f32 %v733
      %v750 = vcvt.s32.f32 %v734
      %v751 = vcvt.s32.f32 %v735
      %v752 = vcvt.s32.f32 %v736
      %v753 = vcvt.s32.f32 %v737
      %v754 = vcvt.s32.f32 %v738
      %v755 = vcvt.s32.f32 %v739
      %v756 = vcvt.s32.f32 %v740
      %v757 = vcvt.s32.f32 %v741
      %v758 = vcvt.s32.f32 %v742
      %759 = vst [vmem:[#allocation3] sm:$0xff] %v743
      %760 = vst [vmem:[#allocation3 + $0x8] sm:$0xff] %v744
      %761 = vst [vmem:[#allocation3 + $0x10] sm:$0xff] %v745
      %762 = vst [vmem:[#allocation3 + $0x18] sm:$0xff] %v746
      %763 = vst [vmem:[#allocation3 + $0x20] sm:$0xff] %v747
      %764 = vst [vmem:[#allocation3 + $0x28] sm:$0xff] %v748
      %765 = vst [vmem:[#allocation3 + $0x30] sm:$0xff] %v749
      %766 = vst [vmem:[#allocation3 + $0x38] sm:$0xff] %v750
      %767 = vst [vmem:[#allocation3 + $0x40] sm:$0xff] %v751
      %768 = vst [vmem:[#allocation3 + $0x48] sm:$0xff] %v752
      %769 = vst [vmem:[#allocation3 + $0x50] sm:$0xff] %v753
      %770 = vst [vmem:[#allocation3 + $0x58] sm:$0xff] %v754
      %771 = vst [vmem:[#allocation3 + $0x60] sm:$0xff] %v755
      %772 = vst [vmem:[#allocation3 + $0x68] sm:$0xff] %v756
      %773 = vst [vmem:[#allocation3 + $0x70] sm:$0xff] %v757
      %774 = vst [vmem:[#allocation3 + $0x78] sm:$0xff] %v758
    $region17: #{tpu_custom_call.1} parent=1 // pred_fallthru
      _
    %p775 = scmp.eq.s32.totalorder 0, 0
    %p776 = pnand %p13, %p775
    %p777 = pneg %p776
    // Predicated region
    $region18: #{tpu_custom_call.1} parent=1 // pred_check
      _
    $region19: #{tpu_custom_call.1} parent=1 // pred_check_branch
      %779 = sbr.rel (%p776) target = $region21
    $region20: #{tpu_custom_call.1} parent=1 // pred_region
      %v780 = vld [vmem:[#allocation2] sm:$0xff]
      %v781 = vld [vmem:[#allocation2 + $0x8] sm:$0xff]
      %v782 = vld [vmem:[#allocation2 + $0x10] sm:$0xff]
      %v783 = vld [vmem:[#allocation2 + $0x18] sm:$0xff]
      %v784 = vld [vmem:[#allocation2 + $0x20] sm:$0xff]
      %v785 = vld [vmem:[#allocation2 + $0x28] sm:$0xff]
      %v786 = vld [vmem:[#allocation2 + $0x30] sm:$0xff]
      %v787 = vld [vmem:[#allocation2 + $0x38] sm:$0xff]
      %v788 = vld [vmem:[#allocation2 + $0x40] sm:$0xff]
      %v789 = vld [vmem:[#allocation2 + $0x48] sm:$0xff]
      %v790 = vld [vmem:[#allocation2 + $0x50] sm:$0xff]
      %v791 = vld [vmem:[#allocation2 + $0x58] sm:$0xff]
      %v792 = vld [vmem:[#allocation2 + $0x60] sm:$0xff]
      %v793 = vld [vmem:[#allocation2 + $0x68] sm:$0xff]
      %v794 = vld [vmem:[#allocation2 + $0x70] sm:$0xff]
      %v795 = vld [vmem:[#allocation2 + $0x78] sm:$0xff]
      %vm796 = vcmp.gt.f32.partialorder %v780, 0.0
      %vm797 = vcmp.gt.f32.partialorder %v781, 0.0
      %vm798 = vcmp.gt.f32.partialorder %v782, 0.0
      %vm799 = vcmp.gt.f32.partialorder %v783, 0.0
      %vm800 = vcmp.gt.f32.partialorder %v784, 0.0
      %vm801 = vcmp.gt.f32.partialorder %v785, 0.0
      %vm802 = vcmp.gt.f32.partialorder %v786, 0.0
      %vm803 = vcmp.gt.f32.partialorder %v787, 0.0
      %vm804 = vcmp.gt.f32.partialorder %v788, 0.0
      %vm805 = vcmp.gt.f32.partialorder %v789, 0.0
      %vm806 = vcmp.gt.f32.partialorder %v790, 0.0
      %vm807 = vcmp.gt.f32.partialorder %v791, 0.0
      %vm808 = vcmp.gt.f32.partialorder %v792, 0.0
      %vm809 = vcmp.gt.f32.partialorder %v793, 0.0
      %vm810 = vcmp.gt.f32.partialorder %v794, 0.0
      %vm811 = vcmp.gt.f32.partialorder %v795, 0.0
      %vm812 = vcmp.ne.s32.totalorder %v34, %v130
      %vm813 = vcmp.ne.s32.totalorder %v35, %v130
      %vm814 = vcmp.ne.s32.totalorder %v36, %v130
      %vm815 = vcmp.ne.s32.totalorder %v37, %v130
      %vm816 = vcmp.ne.s32.totalorder %v38, %v130
      %vm817 = vcmp.ne.s32.totalorder %v39, %v130
      %vm818 = vcmp.ne.s32.totalorder %v40, %v130
      %vm819 = vcmp.ne.s32.totalorder %v41, %v130
      %vm820 = vcmp.ne.s32.totalorder %v42, %v130
      %vm821 = vcmp.ne.s32.totalorder %v43, %v130
      %vm822 = vcmp.ne.s32.totalorder %v44, %v130
      %vm823 = vcmp.ne.s32.totalorder %v45, %v130
      %vm824 = vcmp.ne.s32.totalorder %v46, %v130
      %vm825 = vcmp.ne.s32.totalorder %v47, %v130
      %vm826 = vcmp.ne.s32.totalorder %v48, %v130
      %vm827 = vcmp.ne.s32.totalorder %v49, %v130
      %vm828 = vmand %vm796, %vm812
      %vm829 = vmand %vm797, %vm813
      %vm830 = vmand %vm798, %vm814
      %vm831 = vmand %vm799, %vm815
      %vm832 = vmand %vm800, %vm816
      %vm833 = vmand %vm801, %vm817
      %vm834 = vmand %vm802, %vm818
      %vm835 = vmand %vm803, %vm819
      %vm836 = vmand %vm804, %vm820
      %vm837 = vmand %vm805, %vm821
      %vm838 = vmand %vm806, %vm822
      %vm839 = vmand %vm807, %vm823
      %vm840 = vmand %vm808, %vm824
      %vm841 = vmand %vm809, %vm825
      %vm842 = vmand %vm810, %vm826
      %vm843 = vmand %vm811, %vm827
      %v844 = vsel %vm828, 1, 0
      %v845 = vsel %vm829, 1, 0
      %v846 = vsel %vm830, 1, 0
      %v847 = vsel %vm831, 1, 0
      %v848 = vsel %vm832, 1, 0
      %v849 = vsel %vm833, 1, 0
      %v850 = vsel %vm834, 1, 0
      %v851 = vsel %vm835, 1, 0
      %v852 = vsel %vm836, 1, 0
      %v853 = vsel %vm837, 1, 0
      %v854 = vsel %vm838, 1, 0
      %v855 = vsel %vm839, 1, 0
      %v856 = vsel %vm840, 1, 0
      %v857 = vsel %vm841, 1, 0
      %v858 = vsel %vm842, 1, 0
      %v859 = vsel %vm843, 1, 0
      %v860 = vcvt.s32.f32 %v844
      %v861 = vcvt.s32.f32 %v845
      %v862 = vcvt.s32.f32 %v846
      %v863 = vcvt.s32.f32 %v847
      %v864 = vcvt.s32.f32 %v848
      %v865 = vcvt.s32.f32 %v849
      %v866 = vcvt.s32.f32 %v850
      %v867 = vcvt.s32.f32 %v851
      %v868 = vcvt.s32.f32 %v852
      %v869 = vcvt.s32.f32 %v853
      %v870 = vcvt.s32.f32 %v854
      %v871 = vcvt.s32.f32 %v855
      %v872 = vcvt.s32.f32 %v856
      %v873 = vcvt.s32.f32 %v857
      %v874 = vcvt.s32.f32 %v858
      %v875 = vcvt.s32.f32 %v859
      %876 = vst [vmem:[#allocation3] sm:$0xff] %v860
      %877 = vst [vmem:[#allocation3 + $0x8] sm:$0xff] %v861
      %878 = vst [vmem:[#allocation3 + $0x10] sm:$0xff] %v862
      %879 = vst [vmem:[#allocation3 + $0x18] sm:$0xff] %v863
      %880 = vst [vmem:[#allocation3 + $0x20] sm:$0xff] %v864
      %881 = vst [vmem:[#allocation3 + $0x28] sm:$0xff] %v865
      %882 = vst [vmem:[#allocation3 + $0x30] sm:$0xff] %v866
      %883 = vst [vmem:[#allocation3 + $0x38] sm:$0xff] %v867
      %884 = vst [vmem:[#allocation3 + $0x40] sm:$0xff] %v868
      %885 = vst [vmem:[#allocation3 + $0x48] sm:$0xff] %v869
      %886 = vst [vmem:[#allocation3 + $0x50] sm:$0xff] %v870
      %887 = vst [vmem:[#allocation3 + $0x58] sm:$0xff] %v871
      %888 = vst [vmem:[#allocation3 + $0x60] sm:$0xff] %v872
      %889 = vst [vmem:[#allocation3 + $0x68] sm:$0xff] %v873
      %890 = vst [vmem:[#allocation3 + $0x70] sm:$0xff] %v874
      %891 = vst [vmem:[#allocation3 + $0x78] sm:$0xff] %v875
    $region21: #{tpu_custom_call.1} parent=1 // pred_fallthru
      _
    // Predicated region
    $region22: #{tpu_custom_call.1} parent=1 // pred_check
      _
    $region23: #{tpu_custom_call.1} parent=1 // pred_check_branch
      %893 = sbr.rel (0) target = $region25
    $region24: #{tpu_custom_call.1} parent=1 // pred_region
      %s895 = ssub.s32 2048, 2048
      %896 = vsyncadd [#allocation4], %s895
      %s897 = sshll.u32 [#allocation3], 4
      %s898 = int_to_ptr.vmem [resolvable:$true] %s897
      %903 = dma.vmem_to_hbm [thread:$0]  %s898, 2048, %s2, [#allocation4], 128, 128, 8
    $region25: #{tpu_custom_call.1} parent=1 // pred_fallthru
      _
    // Predicated region
    $region26: #{tpu_custom_call.1} parent=1 // pred_check
      _
    $region27: #{tpu_custom_call.1} parent=1 // pred_check_branch
      %905 = sbr.rel (0) target = $region29
    $region28: #{tpu_custom_call.1} parent=1 // pred_region
      %906 = dma.done [#allocation4], 2048
    $region29: #{tpu_custom_call.1} parent=1 // pred_fallthru
      _
    %907 = vsyncpa [#allocation4], 1

</llo_original>
